<compile_context>
chip_gen: v6e
topology: v6e:2x2x1
jax: 0.10.0
libtpu: 0.0.40
codegen_flags: <defaults>
</compile_context>

<pallas_src>
import functools

import jax
import jax.numpy as jnp
from jax.experimental import pallas as pl
from jax.experimental.pallas import tpu as pltpu


def _downsample1d_kernel(x_ref, w_ref, b_ref, o_ref, *, use_mxu):
    # x_ref: (1, 3*C_in, TL)   de-interleaved taps, k-major along channels
    # w_ref: (C_out, 3*C_in)   fused weight: w[o, k*C_in + c] = W[o, c, k]
    # b_ref: (C_out, 1)
    # o_ref: (1, C_out, TL)
    x = x_ref[0]                     # (3*C_in, TL), contiguous lane-dense load
    w = w_ref[...]                   # (C_out, 3*C_in)
    if use_mxu:
        # Single 2-D MXU matmul with f32 accumulation; native-dtype operands.
        acc = jnp.dot(w, x, preferred_element_type=jnp.float32)
    else:
        # Tiny contraction: MXU would run <4% full, so do VPU broadcast-FMA.
        k_total = w.shape[1]         # K = 3*C_in  (static, <= 96 here)
        acc = jnp.zeros((w.shape[0], x.shape[1]), jnp.float32)
        for k in range(k_total):     # static unroll
            acc = acc + (w[:, k:k + 1].astype(jnp.float32)
                         * x[k:k + 1, :].astype(jnp.float32))
    o_ref[0] = (acc + b_ref[...]).astype(o_ref.dtype)


def downsample1d(x, weight, bias):
    """Conv1d(dim, dim, kernel=3, stride=2, padding=1) forward (NCL layout)."""
    B, C, L = x.shape
    C_out, C_in, K = weight.shape
    assert C_in == C and C_out == C and K == 3
    L_out = (L + 2 * 1 - 3) // 2 + 1            # PyTorch conv output length

    # ---- plain-JAX glue: pad, de-interleave taps, fuse weight --------------
    x_pad = jnp.pad(x, ((0, 0), (0, 0), (1, 1)))          # zero padding = 1
    # tap k holds x_pad[..., 2*l + k] for l in [0, L_out): contiguous streams.
    taps = [x_pad[:, :, k::2][:, :, :L_out] for k in range(3)]
    x_taps = jnp.concatenate(taps, axis=1)                 # (B, 3*C, L_out)

    # Lane-dense output tiling: pad L_out up to a multiple-of-128 tile.
    TL = min(512, 128 * pl.cdiv(min(L_out, 512), 128))
    L_pad = TL * pl.cdiv(L_out, TL)
    if L_pad != L_out:
        x_taps = jnp.pad(x_taps, ((0, 0), (0, 0), (0, L_pad - L_out)))

    # Fused weight: w_fused[o, k*C_in + c] = weight[o, c, k]
    w_fused = jnp.transpose(weight, (0, 2, 1)).reshape(C_out, 3 * C_in)
    bias2 = bias.reshape(C_out, 1)

    use_mxu = C_in > 32
    kernel = functools.partial(_downsample1d_kernel, use_mxu=use_mxu)

    itemsize = jnp.dtype(x.dtype).itemsize
    cost = pl.CostEstimate(
        flops=2 * B * C_out * 3 * C_in * L_out,
        transcendentals=0,
        bytes_accessed=int(x_taps.size * itemsize
                           + w_fused.size * itemsize
                           + bias.size * itemsize
                           + B * C_out * L_out * itemsize),
    )

    out = pl.pallas_call(
        kernel,
        out_shape=jax.ShapeDtypeStruct((B, C_out, L_pad), x.dtype),
        grid=(B, L_pad // TL),
        in_specs=[
            pl.BlockSpec((1, 3 * C_in, TL), lambda b, j: (b, 0, j)),
            pl.BlockSpec((C_out, 3 * C_in), lambda b, j: (0, 0)),  # resident
            pl.BlockSpec((C_out, 1), lambda b, j: (0, 0)),         # resident
        ],
        out_specs=pl.BlockSpec((1, C_out, TL), lambda b, j: (b, 0, j)),
        compiler_params=pltpu.CompilerParams(
            dimension_semantics=("parallel", "parallel"),
            vmem_limit_bytes=32 * 1024 * 1024,
        ),
        cost_estimate=cost,
    )(x_taps, w_fused, bias2)

    return out[:, :, :L_out]


def _reference(x, weight, bias):
    # Pure-JAX reference (XLA conv) for correctness check.
    out = jax.lax.conv_general_dilated(
        x, weight,
        window_strides=(2,),
        padding=((1, 1),),
        dimension_numbers=("NCH", "OIH", "NCH"),
    )
    return out + bias[None, :, None]


if __name__ == "__main__":
    key = jax.random.PRNGKey(0)
    kx, kw, kb = jax.random.split(key, 3)

    B, dim, L = 2, 4, 16   # small shapes consistent with the module's forward

    x = jax.random.normal(kx, (B, dim, L), dtype=jnp.float32)

    # Deterministic init mimicking PyTorch Conv1d default (uniform +/- 1/sqrt(fan_in))
    fan_in = dim * 3
    bound = 1.0 / (fan_in ** 0.5)
    weight = jax.random.uniform(kw, (dim, dim, 3), jnp.float32, -bound, bound)
    bias = jax.random.uniform(kb, (dim,), jnp.float32, -bound, bound)

    out = downsample1d(x, weight, bias)
    out = jax.block_until_ready(out)

    ref = jax.block_until_ready(_reference(x, weight, bias))
    assert out.shape == (B, dim, (L + 2 - 3) // 2 + 1)
    assert jnp.allclose(out, ref, atol=1e-5, rtol=1e-5), "mismatch vs XLA reference"

    print("KERNEL_OK")
</pallas_src>

<mosaic_0001>
module attributes {stable_mosaic.version = 11 : i64} {
  func.func @_downsample1d_kernel(%arg0: i32, %arg1: i32, %arg2: memref<1x12x128xf32, #tpu.memory_space<vmem>>, %arg3: memref<4x12xf32, #tpu.memory_space<vmem>>, %arg4: memref<4x1xf32, #tpu.memory_space<vmem>>, %arg5: memref<1x4x128xf32, #tpu.memory_space<vmem>>) attributes {dimension_semantics = [#tpu.dimension_semantics<parallel>, #tpu.dimension_semantics<parallel>], iteration_bounds = array<i64: 2, 1>, scalar_prefetch = 0 : i64, scratch_operands = 0 : i64, tpu.core_type = #tpu.core_type<tc>, window_params = [{transform_indices = @transform_0, window_bounds = array<i64: 1, 12, 128>}, {pipeline_mode = #tpu.pipeline_mode<synchronous>, transform_indices = @transform_1, window_bounds = array<i64: 4, 12>}, {pipeline_mode = #tpu.pipeline_mode<synchronous>, transform_indices = @transform_2, window_bounds = array<i64: 4, 1>}, {transform_indices = @transform_3, window_bounds = array<i64: 1, 4, 128>}]} {
    %c0 = arith.constant 0 : index
    %c0_0 = arith.constant 0 : index
    %c0_1 = arith.constant 0 : index
    %0 = vector.load %arg2[%c0, %c0_0, %c0_1] : memref<1x12x128xf32, #tpu.memory_space<vmem>>, vector<1x12x128xf32>
    %1 = vector.shape_cast %0 : vector<1x12x128xf32> to vector<12x128xf32>
    %c0_2 = arith.constant 0 : index
    %c0_3 = arith.constant 0 : index
    %2 = vector.load %arg3[%c0_2, %c0_3] : memref<4x12xf32, #tpu.memory_space<vmem>>, vector<4x12xf32>
    %cst = arith.constant 0.000000e+00 : f32
    %3 = vector.broadcast %cst : f32 to vector<4x128xf32>
    %4 = vector.extract_strided_slice %2 {offsets = [0, 0], sizes = [4, 1], strides = [1, 1]} : vector<4x12xf32> to vector<4x1xf32>
    %5 = vector.extract_strided_slice %1 {offsets = [0, 0], sizes = [1, 128], strides = [1, 1]} : vector<12x128xf32> to vector<1x128xf32>
    %6 = vector.broadcast %4 : vector<4x1xf32> to vector<4x128xf32>
    %7 = vector.broadcast %5 : vector<1x128xf32> to vector<4x128xf32>
    %8 = arith.mulf %6, %7 : vector<4x128xf32>
    %9 = arith.addf %3, %8 : vector<4x128xf32>
    %10 = vector.extract_strided_slice %2 {offsets = [0, 1], sizes = [4, 1], strides = [1, 1]} : vector<4x12xf32> to vector<4x1xf32>
    %11 = vector.extract_strided_slice %1 {offsets = [1, 0], sizes = [1, 128], strides = [1, 1]} : vector<12x128xf32> to vector<1x128xf32>
    %12 = vector.broadcast %10 : vector<4x1xf32> to vector<4x128xf32>
    %13 = vector.broadcast %11 : vector<1x128xf32> to vector<4x128xf32>
    %14 = arith.mulf %12, %13 : vector<4x128xf32>
    %15 = arith.addf %9, %14 : vector<4x128xf32>
    %16 = vector.extract_strided_slice %2 {offsets = [0, 2], sizes = [4, 1], strides = [1, 1]} : vector<4x12xf32> to vector<4x1xf32>
    %17 = vector.extract_strided_slice %1 {offsets = [2, 0], sizes = [1, 128], strides = [1, 1]} : vector<12x128xf32> to vector<1x128xf32>
    %18 = vector.broadcast %16 : vector<4x1xf32> to vector<4x128xf32>
    %19 = vector.broadcast %17 : vector<1x128xf32> to vector<4x128xf32>
    %20 = arith.mulf %18, %19 : vector<4x128xf32>
    %21 = arith.addf %15, %20 : vector<4x128xf32>
    %22 = vector.extract_strided_slice %2 {offsets = [0, 3], sizes = [4, 1], strides = [1, 1]} : vector<4x12xf32> to vector<4x1xf32>
    %23 = vector.extract_strided_slice %1 {offsets = [3, 0], sizes = [1, 128], strides = [1, 1]} : vector<12x128xf32> to vector<1x128xf32>
    %24 = vector.broadcast %22 : vector<4x1xf32> to vector<4x128xf32>
    %25 = vector.broadcast %23 : vector<1x128xf32> to vector<4x128xf32>
    %26 = arith.mulf %24, %25 : vector<4x128xf32>
    %27 = arith.addf %21, %26 : vector<4x128xf32>
    %28 = vector.extract_strided_slice %2 {offsets = [0, 4], sizes = [4, 1], strides = [1, 1]} : vector<4x12xf32> to vector<4x1xf32>
    %29 = vector.extract_strided_slice %1 {offsets = [4, 0], sizes = [1, 128], strides = [1, 1]} : vector<12x128xf32> to vector<1x128xf32>
    %30 = vector.broadcast %28 : vector<4x1xf32> to vector<4x128xf32>
    %31 = vector.broadcast %29 : vector<1x128xf32> to vector<4x128xf32>
    %32 = arith.mulf %30, %31 : vector<4x128xf32>
    %33 = arith.addf %27, %32 : vector<4x128xf32>
    %34 = vector.extract_strided_slice %2 {offsets = [0, 5], sizes = [4, 1], strides = [1, 1]} : vector<4x12xf32> to vector<4x1xf32>
    %35 = vector.extract_strided_slice %1 {offsets = [5, 0], sizes = [1, 128], strides = [1, 1]} : vector<12x128xf32> to vector<1x128xf32>
    %36 = vector.broadcast %34 : vector<4x1xf32> to vector<4x128xf32>
    %37 = vector.broadcast %35 : vector<1x128xf32> to vector<4x128xf32>
    %38 = arith.mulf %36, %37 : vector<4x128xf32>
    %39 = arith.addf %33, %38 : vector<4x128xf32>
    %40 = vector.extract_strided_slice %2 {offsets = [0, 6], sizes = [4, 1], strides = [1, 1]} : vector<4x12xf32> to vector<4x1xf32>
    %41 = vector.extract_strided_slice %1 {offsets = [6, 0], sizes = [1, 128], strides = [1, 1]} : vector<12x128xf32> to vector<1x128xf32>
    %42 = vector.broadcast %40 : vector<4x1xf32> to vector<4x128xf32>
    %43 = vector.broadcast %41 : vector<1x128xf32> to vector<4x128xf32>
    %44 = arith.mulf %42, %43 : vector<4x128xf32>
    %45 = arith.addf %39, %44 : vector<4x128xf32>
    %46 = vector.extract_strided_slice %2 {offsets = [0, 7], sizes = [4, 1], strides = [1, 1]} : vector<4x12xf32> to vector<4x1xf32>
    %47 = vector.extract_strided_slice %1 {offsets = [7, 0], sizes = [1, 128], strides = [1, 1]} : vector<12x128xf32> to vector<1x128xf32>
    %48 = vector.broadcast %46 : vector<4x1xf32> to vector<4x128xf32>
    %49 = vector.broadcast %47 : vector<1x128xf32> to vector<4x128xf32>
    %50 = arith.mulf %48, %49 : vector<4x128xf32>
    %51 = arith.addf %45, %50 : vector<4x128xf32>
    %52 = vector.extract_strided_slice %2 {offsets = [0, 8], sizes = [4, 1], strides = [1, 1]} : vector<4x12xf32> to vector<4x1xf32>
    %53 = vector.extract_strided_slice %1 {offsets = [8, 0], sizes = [1, 128], strides = [1, 1]} : vector<12x128xf32> to vector<1x128xf32>
    %54 = vector.broadcast %52 : vector<4x1xf32> to vector<4x128xf32>
    %55 = vector.broadcast %53 : vector<1x128xf32> to vector<4x128xf32>
    %56 = arith.mulf %54, %55 : vector<4x128xf32>
    %57 = arith.addf %51, %56 : vector<4x128xf32>
    %58 = vector.extract_strided_slice %2 {offsets = [0, 9], sizes = [4, 1], strides = [1, 1]} : vector<4x12xf32> to vector<4x1xf32>
    %59 = vector.extract_strided_slice %1 {offsets = [9, 0], sizes = [1, 128], strides = [1, 1]} : vector<12x128xf32> to vector<1x128xf32>
    %60 = vector.broadcast %58 : vector<4x1xf32> to vector<4x128xf32>
    %61 = vector.broadcast %59 : vector<1x128xf32> to vector<4x128xf32>
    %62 = arith.mulf %60, %61 : vector<4x128xf32>
    %63 = arith.addf %57, %62 : vector<4x128xf32>
    %64 = vector.extract_strided_slice %2 {offsets = [0, 10], sizes = [4, 1], strides = [1, 1]} : vector<4x12xf32> to vector<4x1xf32>
    %65 = vector.extract_strided_slice %1 {offsets = [10, 0], sizes = [1, 128], strides = [1, 1]} : vector<12x128xf32> to vector<1x128xf32>
    %66 = vector.broadcast %64 : vector<4x1xf32> to vector<4x128xf32>
    %67 = vector.broadcast %65 : vector<1x128xf32> to vector<4x128xf32>
    %68 = arith.mulf %66, %67 : vector<4x128xf32>
    %69 = arith.addf %63, %68 : vector<4x128xf32>
    %70 = vector.extract_strided_slice %2 {offsets = [0, 11], sizes = [4, 1], strides = [1, 1]} : vector<4x12xf32> to vector<4x1xf32>
    %71 = vector.extract_strided_slice %1 {offsets = [11, 0], sizes = [1, 128], strides = [1, 1]} : vector<12x128xf32> to vector<1x128xf32>
    %72 = vector.broadcast %70 : vector<4x1xf32> to vector<4x128xf32>
    %73 = vector.broadcast %71 : vector<1x128xf32> to vector<4x128xf32>
    %74 = arith.mulf %72, %73 : vector<4x128xf32>
    %75 = arith.addf %69, %74 : vector<4x128xf32>
    %c0_4 = arith.constant 0 : index
    %c0_5 = arith.constant 0 : index
    %76 = vector.load %arg4[%c0_4, %c0_5] : memref<4x1xf32, #tpu.memory_space<vmem>>, vector<4x1xf32>
    %77 = vector.broadcast %76 : vector<4x1xf32> to vector<4x128xf32>
    %78 = arith.addf %75, %77 : vector<4x128xf32>
    %c0_6 = arith.constant 0 : index
    %c0_7 = arith.constant 0 : index
    %c0_8 = arith.constant 0 : index
    %79 = vector.load %arg5[%c0_6, %c0_7, %c0_8] : memref<1x4x128xf32, #tpu.memory_space<vmem>>, vector<1x4x128xf32>
    %80 = vector.shape_cast %79 : vector<1x4x128xf32> to vector<4x128xf32>
    %81 = vector.shape_cast %78 : vector<4x128xf32> to vector<1x4x128xf32>
    tpu.vector_store %arg5[%c0_6, %c0_7, %c0_8], %81 {strides = array<i32>} : memref<1x4x128xf32, #tpu.memory_space<vmem>>, vector<1x4x128xf32>,
    return
  }
  func.func @transform_0(%arg0: i32, %arg1: i32) -> (i32, i32, i32) {
    %c0_i32 = arith.constant 0 : i32
    %c0_i32_0 = arith.constant 0 : i32
    return %arg0, %c0_i32, %arg1 : i32, i32, i32
  }
  func.func @transform_1(%arg0: i32, %arg1: i32) -> (i32, i32) {
    %c0_i32 = arith.constant 0 : i32
    %c0_i32_0 = arith.constant 0 : i32
    %c0_i32_1 = arith.constant 0 : i32
    return %c0_i32, %c0_i32_0 : i32, i32
  }
  func.func @transform_2(%arg0: i32, %arg1: i32) -> (i32, i32) {
    %c0_i32 = arith.constant 0 : i32
    %c0_i32_0 = arith.constant 0 : i32
    %c0_i32_1 = arith.constant 0 : i32
    return %c0_i32, %c0_i32_0 : i32, i32
  }
  func.func @transform_3(%arg0: i32, %arg1: i32) -> (i32, i32, i32) {
    %c0_i32 = arith.constant 0 : i32
    %c0_i32_0 = arith.constant 0 : i32
    return %arg0, %c0_i32, %arg1 : i32, i32, i32
  }
}

</mosaic_0001>

<llo_original>
// kernel: tpu_custom_call.1
$region0: #{tpu_custom_call.1}
  #allocation0 [shape = 'u32[]', space=smem, size = 0x4, offset = 0x4, fixed_abs, tag = 'smem constant byte address 0x4 - core index']
  #allocation1 [shape = 'u32[144,128]{1,0:T(1,128)}', space=vmem, size = 0x12000, scoped, tag = 'internal scratch']
  %s0 = inlined_call_operand.vmem [shape: f32[2,12,128], index: 0, kind: input, shape index: {}]
  %s1 = inlined_call_operand.vmem [shape: f32[4,12], index: 1, kind: input, shape index: {}]
  %s2 = inlined_call_operand.vmem [shape: f32[4,1], index: 2, kind: input, shape index: {}]
  %s3 = inlined_call_operand.hbm [shape: f32[2,4,128], index: 3, kind: output, shape index: {}]
  %s4 = sld [smem:[#allocation0]]
  $region45: #{tpu_custom_call.1} parent=0
    _
  %s6 = ssub.s32 1, %s4
  %s7 = scalar_select 0, %s6, %s4
  $region1: #{tpu_custom_call.1} parent=0
    #allocation2 [shape = 'u8[4096]{0}', space=vmem, size = 0x1000, scoped, tag = 'output window, operand 0']
    #allocation3 [shape = 's32[2]{0}', space=sflag, size = 0x8, scoped, tag = 'scoped memory for tpu_custom_call.1']
    %8 = vsyncpa [#allocation3], 0
    %s9 = scalar_lea.sflag [#allocation3], 1
    %10 = vsyncpa %s9, 0
    loop: start=0, step=1, limit=4
    $region2: #{tpu_custom_call.1} parent=1 // loop_pre_header
      _
    $region3: #{tpu_custom_call.1} parent=1 // loop_header
      %s12 = sphi 0, %s16
      %p13 = scmp.ge.s32.totalorder %s12, 4
      %s19 = sphi 0, %s31
      %s20 = sphi 0, %s27
      %s21 = sphi 0, %s19
      %s22 = sphi 0, %s20
      %s23 = sphi 0, %s21
      %s24 = sphi 0, %s22
      %s36 = sphi 0, %s38
      %s39 = sphi 0, %s36
      %s40 = sphi 0, %s39
      %s56 = sphi 0, %s40
      %s60 = sphi 0, %s60
      %s62 = sphi 0, %s60
      %s63 = sphi 0, %s62
      %s77 = sphi 0, %s63
      %s81 = sphi 0, %s81
      %s83 = sphi 0, %s81
      %s84 = sphi 0, %s83
      %s98 = sphi 0, %s84
      %s106 = sphi 0, %s108
      %s109 = sphi 0, %s106
      %s110 = sphi 0, %s109
      %s126 = sphi 0, %s110
    $region4: #{tpu_custom_call.1} parent=1 // loop_header_branch
      %15 = sbr.rel (%p13) target = $region8
    $region5: #{tpu_custom_call.1} parent=1 // loop_body
      %s17 = ssub.s32 %s12, 1
      %s18 = ssub.s32 %s12, 2
      %s25 = sadd.s32 1, %s20
      %p26 = scmp.ge.s32.totalorder %s25, 1
      %s27 = scalar_select %p26, 0, %s25
      %s28 = sadd.s32 1, %s19
      %s29 = scalar_select %p26, %s28, %s19
      %p30 = scmp.ge.s32.totalorder %s29, 2
      %s31 = scalar_select %p30, 0, %s29
      %s32 = ssub.s32 %s19, %s31
      %s33 = ssub.s32 %s20, %s27
      %s34 = sor.u32 %s32, %s33
      %p35 = scmp.eq.s32.totalorder %s34, 0
      %s37 = sadd.s32 %s36, 1
      %s38 = scalar_select %p35, %s36, %s37
      %p41 = pneg %p35
      %p42 = scmp.eq.s32.totalorder %s12, 1
      %p43 = por %p41, %p42
      %p44 = scmp.ne.s32.totalorder %s36, %s39
      %p45 = scmp.eq.s32.totalorder %s12, 0
      %p46 = por %p44, %p45
      %p47 = scmp.ne.s32.totalorder %s36, %s39
      %p48 = scmp.eq.s32.totalorder %s17, 1
      %p49 = por %p47, %p48
      %p50 = scmp.ne.s32.totalorder %s39, %s40
      %p51 = scmp.eq.s32.totalorder %s17, 0
      %p52 = por %p50, %p51
      %p53 = scmp.ne.s32.totalorder %s39, %s40
      %p54 = scmp.eq.s32.totalorder %s18, 1
      %p55 = por %p53, %p54
      %p57 = scmp.ne.s32.totalorder %s40, %s56
      %p58 = scmp.eq.s32.totalorder %s18, 0
      %p59 = por %p57, %p58
      %s61 = sadd.s32 %s60, 1
      %p64 = scmp.eq.s32.totalorder %s12, 1
      %p65 = scmp.ne.s32.totalorder %s60, %s62
      %p66 = scmp.eq.s32.totalorder %s12, 0
      %p67 = por %p65, %p66
      %p68 = scmp.ne.s32.totalorder %s60, %s62
      %p69 = scmp.eq.s32.totalorder %s17, 1
      %p70 = por %p68, %p69
      %p71 = scmp.ne.s32.totalorder %s62, %s63
      %p72 = scmp.eq.s32.totalorder %s17, 0
      %p73 = por %p71, %p72
      %p74 = scmp.ne.s32.totalorder %s62, %s63
      %p75 = scmp.eq.s32.totalorder %s18, 1
      %p76 = por %p74, %p75
      %p78 = scmp.ne.s32.totalorder %s63, %s77
      %p79 = scmp.eq.s32.totalorder %s18, 0
      %p80 = por %p78, %p79
      %s82 = sadd.s32 %s81, 1
      %p85 = scmp.eq.s32.totalorder %s12, 1
      %p86 = scmp.ne.s32.totalorder %s81, %s83
      %p87 = scmp.eq.s32.totalorder %s12, 0
      %p88 = por %p86, %p87
      %p89 = scmp.ne.s32.totalorder %s81, %s83
      %p90 = scmp.eq.s32.totalorder %s17, 1
      %p91 = por %p89, %p90
      %p92 = scmp.ne.s32.totalorder %s83, %s84
      %p93 = scmp.eq.s32.totalorder %s17, 0
      %p94 = por %p92, %p93
      %p95 = scmp.ne.s32.totalorder %s83, %s84
      %p96 = scmp.eq.s32.totalorder %s18, 1
      %p97 = por %p95, %p96
      %p99 = scmp.ne.s32.totalorder %s84, %s98
      %p100 = scmp.eq.s32.totalorder %s18, 0
      %p101 = por %p99, %p100
      %s102 = ssub.s32 %s19, %s31
      %s103 = ssub.s32 %s20, %s27
      %s104 = sor.u32 %s102, %s103
      %p105 = scmp.eq.s32.totalorder %s104, 0
      %s107 = sadd.s32 %s106, 1
      %s108 = scalar_select %p105, %s106, %s107
      %p111 = pneg %p105
      %p112 = scmp.eq.s32.totalorder %s12, 1
      %p113 = por %p111, %p112
      %p114 = scmp.ne.s32.totalorder %s106, %s109
      %p115 = scmp.eq.s32.totalorder %s12, 0
      %p116 = por %p114, %p115
      %p117 = scmp.ne.s32.totalorder %s106, %s109
      %p118 = scmp.eq.s32.totalorder %s17, 1
      %p119 = por %p117, %p118
      %p120 = scmp.ne.s32.totalorder %s109, %s110
      %p121 = scmp.eq.s32.totalorder %s17, 0
      %p122 = por %p120, %p121
      %p123 = scmp.ne.s32.totalorder %s109, %s110
      %p124 = scmp.eq.s32.totalorder %s18, 1
      %p125 = por %p123, %p124
      %p127 = scmp.ne.s32.totalorder %s110, %s126
      %p128 = scmp.eq.s32.totalorder %s18, 0
      %p129 = por %p127, %p128
      %p130 = scmp.le.s32.totalorder 1, %s12
      %p131 = scmp.lt.s32.totalorder %s12, 3
      %p132 = pnand %p130, %p131
      %p133 = pneg %p132
      // Predicated region
      $region9: #{tpu_custom_call.1} parent=5 // pred_check
        _
      $region10: #{tpu_custom_call.1} parent=5 // pred_check_branch
        %135 = sbr.rel (%p132) target = $region12
      $region11: #{tpu_custom_call.1} parent=5 // pred_region
        %s136 = ssub.s32 %s12, 1
        // Predicated region
        $region13: #{tpu_custom_call.1} parent=11 // pred_check
          %p137 = pneg %p73
        $region14: #{tpu_custom_call.1} parent=11 // pred_check_branch
          %139 = sbr.rel (%p137) target = $region16
        $region15: #{tpu_custom_call.1} parent=11 // pred_region
          _
        $region16: #{tpu_custom_call.1} parent=11 // pred_fallthru
          _
        // Predicated region
        $region17: #{tpu_custom_call.1} parent=11 // pred_check
          %p140 = pneg %p94
        $region18: #{tpu_custom_call.1} parent=11 // pred_check_branch
          %142 = sbr.rel (%p140) target = $region20
        $region19: #{tpu_custom_call.1} parent=11 // pred_region
          _
        $region20: #{tpu_custom_call.1} parent=11 // pred_fallthru
          _
      $region12: #{tpu_custom_call.1} parent=5 // pred_fallthru
        _
      %p143 = scmp.lt.s32.totalorder %s12, 2
      // Predicated region
      $region21: #{tpu_custom_call.1} parent=5 // pred_check
        %p144 = pneg %p143
      $region22: #{tpu_custom_call.1} parent=5 // pred_check_branch
        %146 = sbr.rel (%p144) target = $region24
      $region23: #{tpu_custom_call.1} parent=5 // pred_region
        // Predicated region
        $region25: #{tpu_custom_call.1} parent=23 // pred_check
          %p147 = pneg %p46
        $region26: #{tpu_custom_call.1} parent=23 // pred_check_branch
          %149 = sbr.rel (%p147) target = $region28
        $region27: #{tpu_custom_call.1} parent=23 // pred_region
          %p150 = scmp.lt.s32.totalorder %s19, 1
          %s151 = scalar_select %p150, %s19, 1
          %p152 = scmp.lt.s32.totalorder %s20, 0
          %s153 = scalar_select %p152, %s20, 0
          %s154 = smul.addr %s151, 2
          %s155 = sadd.s32 %s153, %s154
          %s156 = smul.addr %s155, 8
          %s157 = scalar_lea.vmem %s0, %s156
        $region28: #{tpu_custom_call.1} parent=23 // pred_fallthru
          _
      $region24: #{tpu_custom_call.1} parent=5 // pred_fallthru
        _
      %p158 = scmp.le.s32.totalorder 1, %s12
      %p159 = scmp.lt.s32.totalorder %s12, 3
      %p160 = pnand %p158, %p159
      %p161 = pneg %p160
      // Predicated region
      $region29: #{tpu_custom_call.1} parent=5 // pred_check
        _
      $region30: #{tpu_custom_call.1} parent=5 // pred_check_branch
        %163 = sbr.rel (%p160) target = $region32
      $region31: #{tpu_custom_call.1} parent=5 // pred_region
        %s164 = ssub.s32 %s12, 1
        %p165 = scmp.lt.s32.totalorder %s21, 1
        %s166 = scalar_select %p165, %s21, 1
        %p167 = scmp.lt.s32.totalorder %s22, 0
        %s168 = scalar_select %p167, %s22, 0
        %s169 = smul.addr %s166, 2
        %s170 = sadd.s32 %s168, %s169
        %s171 = smul.addr %s170, 8
        %s172 = scalar_lea.vmem %s0, %s171
        %p173 = pneg %p52
        %p174 = pneg %p49
        %p175 = pneg %p73
        %p176 = pneg %p70
        %p177 = pneg %p94
        %p178 = pneg %p91
        %p179 = pneg %p122
        %p180 = pneg %p119
        %s181 = sand.u32 %s109, 1
        %s182 = scalar_lea.sflag [#allocation3], %s181
        %s183 = sand.u32 %s109, 1
        %s184 = smul.addr %s183, 4
        %s185 = scalar_lea.vmem [#allocation2], %s184
        %p186 = scmp.lt.s32.totalorder %s21, 1
        %s187 = scalar_select %p186, %s21, 1
        %p188 = scmp.lt.s32.totalorder %s22, 0
        %s189 = scalar_select %p188, %s22, 0
        %s190 = smul.addr %s187, 2
        %s191 = sadd.s32 %s189, %s190
        %s192 = smul.addr %s191, 8
        %s193 = scalar_lea.vmem %s0, %s192
        %v194 = vld [vmem:[%s193] sm:$0xff]
        %v195 = vld [vmem:[%s193 + $0x8] sm:$0xf]
        %v196 = vld [vmem:[%s1] sm:$0xf]
        %198 = vset.pattern.permute.xlu0 0
        %199 = vperm.xlu0 %198, %v196
        %v200 = vpop.permute.xlu0 %199
        %v202 = vlaneseq
        %v203 = vshrl.u32 %v202, 7
        %v204 = vsub.s32 0, %v203
        %v205 = vrot.slane %v194, %v204
        %v206 = vmul.f32 %v200, %v205
        %v207 = vadd.f32 %v206, 0.0
        %208 = vset.pattern.permute.xlu0 1
        %209 = vperm.xlu0 %208, %v196
        %v210 = vpop.permute.xlu0 %209
        %v212 = vlaneseq
        %v213 = vshrl.u32 %v212, 7
        %v214 = vsub.s32 1, %v213
        %v215 = vrot.slane %v194, %v214
        %v216 = vmul.f32 %v210, %v215
        %v217 = vadd.f32 %v207, %v216
        %218 = vset.pattern.permute.xlu0 2
        %219 = vperm.xlu0 %218, %v196
        %v220 = vpop.permute.xlu0 %219
        %v222 = vlaneseq
        %v223 = vshrl.u32 %v222, 7
        %v224 = vsub.s32 2, %v223
        %v225 = vrot.slane %v194, %v224
        %v226 = vmul.f32 %v220, %v225
        %v227 = vadd.f32 %v217, %v226
        %228 = vset.pattern.permute.xlu0 3
        %229 = vperm.xlu0 %228, %v196
        %v230 = vpop.permute.xlu0 %229
        %v232 = vlaneseq
        %v233 = vshrl.u32 %v232, 7
        %v234 = vsub.s32 3, %v233
        %v235 = vrot.slane %v194, %v234
        %v236 = vmul.f32 %v230, %v235
        %v237 = vadd.f32 %v227, %v236
        %238 = vset.pattern.permute.xlu0 4
        %239 = vperm.xlu0 %238, %v196
        %v240 = vpop.permute.xlu0 %239
        %v242 = vlaneseq
        %v243 = vshrl.u32 %v242, 7
        %v244 = vsub.s32 4, %v243
        %v245 = vrot.slane %v194, %v244
        %v246 = vmul.f32 %v240, %v245
        %v247 = vadd.f32 %v237, %v246
        %248 = vset.pattern.permute.xlu0 5
        %249 = vperm.xlu0 %248, %v196
        %v250 = vpop.permute.xlu0 %249
        %v252 = vlaneseq
        %v253 = vshrl.u32 %v252, 7
        %v254 = vsub.s32 5, %v253
        %v255 = vrot.slane %v194, %v254
        %v256 = vmul.f32 %v250, %v255
        %v257 = vadd.f32 %v247, %v256
        %258 = vset.pattern.permute.xlu0 6
        %259 = vperm.xlu0 %258, %v196
        %v260 = vpop.permute.xlu0 %259
        %v262 = vlaneseq
        %v263 = vshrl.u32 %v262, 7
        %v264 = vsub.s32 6, %v263
        %v265 = vrot.slane %v194, %v264
        %v266 = vmul.f32 %v260, %v265
        %v267 = vadd.f32 %v257, %v266
        %268 = vset.pattern.permute.xlu0 7
        %269 = vperm.xlu0 %268, %v196
        %v270 = vpop.permute.xlu0 %269
        %v272 = vlaneseq
        %v273 = vshrl.u32 %v272, 7
        %v274 = vsub.s32 7, %v273
        %v275 = vrot.slane %v194, %v274
        %v276 = vmul.f32 %v270, %v275
        %v277 = vadd.f32 %v267, %v276
        %278 = vset.pattern.permute.xlu0 8
        %279 = vperm.xlu0 %278, %v196
        %v280 = vpop.permute.xlu0 %279
        %v282 = vlaneseq
        %v283 = vshrl.u32 %v282, 7
        %v284 = vsub.s32 0, %v283
        %v285 = vrot.slane %v195, %v284
        %v286 = vmul.f32 %v280, %v285
        %v287 = vadd.f32 %v277, %v286
        %288 = vset.pattern.permute.xlu0 9
        %289 = vperm.xlu0 %288, %v196
        %v290 = vpop.permute.xlu0 %289
        %v292 = vlaneseq
        %v293 = vshrl.u32 %v292, 7
        %v294 = vsub.s32 1, %v293
        %v295 = vrot.slane %v195, %v294
        %v296 = vmul.f32 %v290, %v295
        %v297 = vadd.f32 %v287, %v296
        %298 = vset.pattern.permute.xlu0 10
        %299 = vperm.xlu0 %298, %v196
        %v300 = vpop.permute.xlu0 %299
        %v302 = vlaneseq
        %v303 = vshrl.u32 %v302, 7
        %v304 = vsub.s32 2, %v303
        %v305 = vrot.slane %v195, %v304
        %v306 = vmul.f32 %v300, %v305
        %v307 = vadd.f32 %v297, %v306
        %308 = vset.pattern.permute.xlu0 11
        %309 = vperm.xlu0 %308, %v196
        %v310 = vpop.permute.xlu0 %309
        %v312 = vlaneseq
        %v313 = vshrl.u32 %v312, 7
        %v314 = vsub.s32 3, %v313
        %v315 = vrot.slane %v195, %v314
        %v316 = vmul.f32 %v310, %v315
        %v317 = vadd.f32 %v307, %v316
        %v318 = vld [vmem:[%s2] sm:$0xf]
        %320 = vset.pattern.permute.xlu0 0
        %321 = vperm.xlu0 %320, %v318
        %v322 = vpop.permute.xlu0 %321
        %v324 = vadd.f32 %v317, %v322
        %325 = vst [vmem:[%s185] sm:$0xf] %v324
        %s326 = sand.u32 %s109, 1
        %s327 = scalar_lea.sflag [#allocation3], %s326
        %s328 = sand.u32 %s109, 1
        %s329 = smul.addr %s328, 4
        %s330 = scalar_lea.vmem [#allocation2], %s329
        // Predicated region
        $region33: #{tpu_custom_call.1} parent=31 // pred_check
          %p331 = pneg %p119
        $region34: #{tpu_custom_call.1} parent=31 // pred_check_branch
          %333 = sbr.rel (%p331) target = $region36
        $region35: #{tpu_custom_call.1} parent=31 // pred_region
          %s335 = ssub.s32 64, 64
          %336 = vsyncadd %s327, %s335
          %s337 = sadd.s32 %s22, %s21
          %s338 = smul.addr %s337, 64
          %s339 = scalar_lea.hbm %s3, %s338
          %s341 = sshll.u32 %s330, 4
          %s342 = int_to_ptr.vmem [resolvable:$true] %s341
          %344 = dma.vmem_to_hbm [thread:$0]  %s342, 64, %s339, %s327
        $region36: #{tpu_custom_call.1} parent=31 // pred_fallthru
          _
      $region32: #{tpu_custom_call.1} parent=5 // pred_fallthru
        _
      %p345 = scmp.le.s32.totalorder 2, %s12
      // Predicated region
      $region37: #{tpu_custom_call.1} parent=5 // pred_check
        %p346 = pneg %p345
      $region38: #{tpu_custom_call.1} parent=5 // pred_check_branch
        %348 = sbr.rel (%p346) target = $region40
      $region39: #{tpu_custom_call.1} parent=5 // pred_region
        %s349 = ssub.s32 %s12, 2
        // Predicated region
        $region41: #{tpu_custom_call.1} parent=39 // pred_check
          %p350 = pneg %p125
        $region42: #{tpu_custom_call.1} parent=39 // pred_check_branch
          %352 = sbr.rel (%p350) target = $region44
        $region43: #{tpu_custom_call.1} parent=39 // pred_region
          %s353 = sand.u32 %s110, 1
          %s354 = scalar_lea.sflag [#allocation3], %s353
          %s355 = sand.u32 %s110, 1
          %s356 = smul.addr %s355, 4
          %s357 = scalar_lea.vmem [#allocation2], %s356
          %358 = dma.done %s354, 64
        $region44: #{tpu_custom_call.1} parent=39 // pred_fallthru
          _
      $region40: #{tpu_custom_call.1} parent=5 // pred_fallthru
        _
    $region6: #{tpu_custom_call.1} parent=1 // loop_footer
      %s16 = sadd.s32 1, %s12
    $region7: #{tpu_custom_call.1} parent=1 // loop_footer_branch
      %11 = sbr.rel target = $region3
    $region8: #{tpu_custom_call.1} parent=1 // loop_exit
      _
    %359 = vsyncpa [#allocation3], 1
    %s360 = scalar_lea.sflag [#allocation3], 1
    %361 = vsyncpa %s360, 1

</llo_original>
